<compile_context>
chip_gen: v6e
topology: v6e:2x2x1
jax: 0.10.0
libtpu: 0.0.40
codegen_flags: <defaults>
</compile_context>

<pallas_src>
import jax
import jax.numpy as jnp
from jax.experimental import pallas as pl
from jax.experimental.pallas import tpu as pltpu

BACKBONE_OUT_CHANNELS = 64
NUM_CLASSES = 13
LANE = 128
# Large row tiles: the 64x13 matmul is trivial, so the kernel is entirely
# HBM-bandwidth / grid-step-overhead bound.  8192 rows gives ~1-2 MiB of
# per-step input DMA (>> the ~0.35 us step overhead) while the double-buffered
# working set stays well under scoped VMEM on every generation once the
# output block is lane-dense.
TILE_N_DEFAULT = 8192


def seg_head_kernel(feat_ref, w_ref, b_ref, logits_t_ref):
    # logits^T = W @ feat^T : contract the 64-channel (last) axes of the
    # (13, 64) weight and the (tile_n, 64) feature block -> (13, tile_n).
    # The result's lane dim is tile_n (dense, multiple of 128), so the store
    # is an unmasked vst and the VMEM output tile has no lane padding.
    logits_t = jax.lax.dot_general(
        w_ref[...], feat_ref[...],
        dimension_numbers=(((1,), (1,)), ((), ())),
        preferred_element_type=jnp.float32)
    logits_t = logits_t + b_ref[...].astype(jnp.float32)
    logits_t_ref[...] = logits_t.astype(logits_t_ref.dtype)


def _round_up(x, m):
    return ((x + m - 1) // m) * m


def _select_tile_n(n, tile_n):
    """Row-tile selection.

    - tile_n becomes the output lane dim, so it must be a multiple of 128
      unless it covers the whole array (block == array dim is always legal).
    - Auto mode caps the tile so the "parallel" grid has >= 2 tiles whenever
      N is large enough (keeps both v7x TensorCores busy).
    """
    if tile_n is not None:
        if tile_n >= n:
            return n                      # single full-extent block
        return max(LANE, (tile_n // LANE) * LANE)
    if n <= 2 * LANE:
        return n                          # too small to split usefully
    tile_n = min(TILE_N_DEFAULT, _round_up(pl.cdiv(n, 2), LANE))
    return max(LANE, (tile_n // LANE) * LANE)


def segmentor_forward(feat, weight, bias, segment=None, *,
                      tile_n=None, out_dtype=jnp.float32):
    """feat: (N, 64) f32/bf16 backbone point features.
    weight: (13, 64) seg_head weight in PyTorch nn.Linear (out, in) layout.
    bias: (13,) f32.
    segment: (N,) int32 labels (-1 = ignore) — unused: the reference forward
    computes-and-discards the loss (see TODO above).
    Returns dict(seg_logits=(N, 13)) matching the reference forward."""
    del segment
    n, c = feat.shape
    assert c == BACKBONE_OUT_CHANNELS
    assert weight.shape == (NUM_CLASSES, BACKBONE_OUT_CHANNELS)

    # Match operand dtypes so bf16 features use the native bf16 MXU path
    # (f32 accumulation comes from preferred_element_type in the kernel).
    weight = weight.astype(feat.dtype)
    bias2d = bias.reshape(NUM_CLASSES, 1).astype(jnp.float32)

    tile = _select_tile_n(n, tile_n)
    n_tiles = pl.cdiv(n, tile)            # ragged tail block masked by Pallas

    grid_spec = pltpu.PrefetchScalarGridSpec(
        num_scalar_prefetch=0,
        grid=(n_tiles,),
        in_specs=[
            pl.BlockSpec((tile, BACKBONE_OUT_CHANNELS), lambda i: (i, 0)),
            pl.BlockSpec((NUM_CLASSES, BACKBONE_OUT_CHANNELS),
                         lambda i: (0, 0)),
            pl.BlockSpec((NUM_CLASSES, 1), lambda i: (0, 0)),
        ],
        out_specs=pl.BlockSpec((NUM_CLASSES, tile), lambda i: (0, i)),
    )

    logits_t = pl.pallas_call(
        seg_head_kernel,
        grid_spec=grid_spec,
        out_shape=jax.ShapeDtypeStruct((NUM_CLASSES, n), out_dtype),
        compiler_params=pltpu.CompilerParams(
            # No cross-step accumulators -> safe to shard the row-tile axis
            # across both v7x TensorCores; neutral on v5e/v6e.
            dimension_semantics=("parallel",),
            # Explicit scoped-VMEM budget (working set is only a few MiB with
            # the lane-dense output, even at tile=8192 double-buffered).
            vmem_limit_bytes=32 * 1024 * 1024,
        ),
    )(feat, weight, bias2d)

    # Back to the reference (N, 13) layout.  This single cheap (13, N) ->
    # (N, 13) copy costs far less than the masked 13-lane stores it replaces.
    return dict(seg_logits=logits_t.T)


if __name__ == "__main__":
    key = jax.random.PRNGKey(0)
    k_feat, k_w, k_b, k_seg = jax.random.split(key, 4)

    N = 256  # number of points (backbone output rows)
    # Backbone output features (stand-in for PointTransformerV3 output).
    feat = jax.random.normal(
        k_feat, (N, BACKBONE_OUT_CHANNELS), dtype=jnp.float32)
    # seg_head params: nn.Linear(64, 13), PyTorch (out, in) weight layout.
    bound = 1.0 / (BACKBONE_OUT_CHANNELS ** 0.5)
    weight = jax.random.uniform(
        k_w, (NUM_CLASSES, BACKBONE_OUT_CHANNELS),
        minval=-bound, maxval=bound, dtype=jnp.float32)
    bias = jax.random.uniform(
        k_b, (NUM_CLASSES,), minval=-bound, maxval=bound, dtype=jnp.float32)
    # Ground-truth segments with some ignore_index (-1) entries (unused).
    segment = jax.random.randint(k_seg, (N,), -1, NUM_CLASSES, dtype=jnp.int32)

    # 1) Single-tile f32 path (N small -> block == full array dims).
    out = segmentor_forward(feat, weight, bias, segment)
    seg_logits = jax.block_until_ready(out["seg_logits"])
    ref = feat @ weight.T + bias
    assert seg_logits.shape == (N, NUM_CLASSES)
    assert jnp.allclose(seg_logits, ref, atol=1e-4, rtol=1e-4)

    # 2) Multi-tile path with a ragged tail block (grid=2, last block partial,
    #    masked at writeback by Pallas).
    N2 = 200
    feat2 = jax.random.normal(
        k_feat, (N2, BACKBONE_OUT_CHANNELS), dtype=jnp.float32)
    out2 = segmentor_forward(feat2, weight, bias, tile_n=128)
    seg_logits2 = jax.block_until_ready(out2["seg_logits"])
    ref2 = feat2 @ weight.T + bias
    assert seg_logits2.shape == (N2, NUM_CLASSES)
    assert jnp.allclose(seg_logits2, ref2, atol=1e-4, rtol=1e-4)

    # 3) Auto-tiled path (>= 2 tiles for the v7x megacore) with bf16 features
    #    (halves the dominant (N, 64) HBM read; f32 accumulation on the MXU).
    N3 = 400
    feat3 = jax.random.normal(
        k_feat, (N3, BACKBONE_OUT_CHANNELS),
        dtype=jnp.float32).astype(jnp.bfloat16)
    out3 = segmentor_forward(feat3, weight, bias)
    seg_logits3 = jax.block_until_ready(out3["seg_logits"])
    w_bf16_as_f32 = weight.astype(jnp.bfloat16).astype(jnp.float32)
    ref3 = feat3.astype(jnp.float32) @ w_bf16_as_f32.T + bias
    assert seg_logits3.shape == (N3, NUM_CLASSES)
    assert jnp.allclose(seg_logits3, ref3, atol=5e-3, rtol=5e-3)

    print("KERNEL_OK")
</pallas_src>

<mosaic_0001>
module attributes {stable_mosaic.version = 11 : i64} {
  func.func @seg_head_kernel(%arg0: i32, %arg1: memref<256x64xf32, #tpu.memory_space<vmem>>, %arg2: memref<13x64xf32, #tpu.memory_space<vmem>>, %arg3: memref<13x1xf32, #tpu.memory_space<vmem>>, %arg4: memref<13x256xf32, #tpu.memory_space<vmem>>) attributes {dimension_semantics = [#tpu.dimension_semantics<parallel>], iteration_bounds = array<i64: 1>, scalar_prefetch = 0 : i64, scratch_operands = 0 : i64, tpu.core_type = #tpu.core_type<tc>, window_params = [{transform_indices = @transform_0, window_bounds = array<i64: 256, 64>}, {pipeline_mode = #tpu.pipeline_mode<synchronous>, transform_indices = @transform_1, window_bounds = array<i64: 13, 64>}, {pipeline_mode = #tpu.pipeline_mode<synchronous>, transform_indices = @transform_2, window_bounds = array<i64: 13, 1>}, {transform_indices = @transform_3, window_bounds = array<i64: 13, 256>}]} {
    %c0 = arith.constant 0 : index
    %c0_0 = arith.constant 0 : index
    %0 = vector.load %arg2[%c0, %c0_0] : memref<13x64xf32, #tpu.memory_space<vmem>>, vector<13x64xf32>
    %c0_1 = arith.constant 0 : index
    %c0_2 = arith.constant 0 : index
    %1 = vector.load %arg1[%c0_1, %c0_2] : memref<256x64xf32, #tpu.memory_space<vmem>>, vector<256x64xf32>
    %cst = arith.constant dense<0.000000e+00> : vector<13x256xf32>
    %2 = tpu.matmul %0, %1, %cst {dimension_numbers = #tpu.dot_dimension_numbers<[1], [1], [0], [0], [0, 0, 1, 0], [], []>} : vector<13x64xf32>, vector<256x64xf32>, vector<13x256xf32> -> vector<13x256xf32>
    %c0_3 = arith.constant 0 : index
    %c0_4 = arith.constant 0 : index
    %3 = vector.load %arg3[%c0_3, %c0_4] : memref<13x1xf32, #tpu.memory_space<vmem>>, vector<13x1xf32>
    %4 = vector.broadcast %3 : vector<13x1xf32> to vector<13x256xf32>
    %5 = arith.addf %2, %4 : vector<13x256xf32>
    %c0_5 = arith.constant 0 : index
    %c0_6 = arith.constant 0 : index
    %6 = vector.load %arg4[%c0_5, %c0_6] : memref<13x256xf32, #tpu.memory_space<vmem>>, vector<13x256xf32>
    tpu.vector_store %arg4[%c0_5, %c0_6], %5 {strides = array<i32>} : memref<13x256xf32, #tpu.memory_space<vmem>>, vector<13x256xf32>,
    return
  }
  func.func @transform_0(%arg0: i32) -> (i32, i32) {
    %c0_i32 = arith.constant 0 : i32
    %c0_i32_0 = arith.constant 0 : i32
    return %arg0, %c0_i32 : i32, i32
  }
  func.func @transform_1(%arg0: i32) -> (i32, i32) {
    %c0_i32 = arith.constant 0 : i32
    %c0_i32_0 = arith.constant 0 : i32
    %c0_i32_1 = arith.constant 0 : i32
    return %c0_i32, %c0_i32_0 : i32, i32
  }
  func.func @transform_2(%arg0: i32) -> (i32, i32) {
    %c0_i32 = arith.constant 0 : i32
    %c0_i32_0 = arith.constant 0 : i32
    %c0_i32_1 = arith.constant 0 : i32
    return %c0_i32, %c0_i32_0 : i32, i32
  }
  func.func @transform_3(%arg0: i32) -> (i32, i32) {
    %c0_i32 = arith.constant 0 : i32
    %c0_i32_0 = arith.constant 0 : i32
    return %c0_i32, %arg0 : i32, i32
  }
}

</mosaic_0001>

<llo_original>
// kernel: tpu_custom_call.1
$region0: #{tpu_custom_call.1}
  #allocation0 [shape = 'u32[]', space=smem, size = 0x4, offset = 0x4, fixed_abs, tag = 'smem constant byte address 0x4 - core index']
  #allocation1 [shape = 'u32[144,128]{1,0:T(1,128)}', space=vmem, size = 0x12000, scoped, tag = 'internal scratch']
  %s0 = inlined_call_operand.vmem [shape: f32[256,64], index: 0, kind: input, shape index: {}]
  %s1 = inlined_call_operand.vmem [shape: f32[13,64], index: 1, kind: input, shape index: {}]
  %s2 = inlined_call_operand.vmem [shape: f32[13,1], index: 2, kind: input, shape index: {}]
  %s3 = inlined_call_operand.hbm [shape: f32[13,256], index: 3, kind: output, shape index: {}]
  %s4 = sld [smem:[#allocation0]]
  $region22: #{tpu_custom_call.1} parent=0
    _
  %s6 = ssub.s32 1, %s4
  %s7 = scalar_select 0, %s6, %s4
  $region1: #{tpu_custom_call.1} parent=0
    #allocation2 [shape = 'u8[16384]{0}', space=vmem, size = 0x4000, scoped, tag = 'output window, operand 0, single buffered']
    #allocation3 [shape = 's32[1]{0}', space=sflag, size = 0x4, scoped, tag = 'scoped memory for tpu_custom_call.1']
    %8 = vsyncpa [#allocation3], 0
    // Predicated region
    $region2: #{tpu_custom_call.1} parent=1 // pred_check
      _
    $region3: #{tpu_custom_call.1} parent=1 // pred_check_branch
      %10 = sbr.rel (0) target = $region5
    $region4: #{tpu_custom_call.1} parent=1 // pred_region
      _
    $region5: #{tpu_custom_call.1} parent=1 // pred_fallthru
      _
    // Predicated region
    $region6: #{tpu_custom_call.1} parent=1 // pred_check
      _
    $region7: #{tpu_custom_call.1} parent=1 // pred_check_branch
      %12 = sbr.rel (0) target = $region9
    $region8: #{tpu_custom_call.1} parent=1 // pred_region
      _
    $region9: #{tpu_custom_call.1} parent=1 // pred_fallthru
      _
    // Predicated region
    $region10: #{tpu_custom_call.1} parent=1 // pred_check
      _
    $region11: #{tpu_custom_call.1} parent=1 // pred_check_branch
      %14 = sbr.rel (0) target = $region13
    $region12: #{tpu_custom_call.1} parent=1 // pred_region
      _
    $region13: #{tpu_custom_call.1} parent=1 // pred_fallthru
      _
    %v15 = vld [vmem:[%s1] sm:$0xff]
    %v16 = vld [vmem:[%s1 + $0x8] sm:$0x1f]
    %v17 = vld [vmem:[%s0] sm:$0xff]
    %v18 = vld [vmem:[%s0 + $0x8] sm:$0xff]
    %v19 = vld [vmem:[%s0 + $0x10] sm:$0xff]
    %v20 = vld [vmem:[%s0 + $0x18] sm:$0xff]
    %v21 = vld [vmem:[%s0 + $0x20] sm:$0xff]
    %v22 = vld [vmem:[%s0 + $0x28] sm:$0xff]
    %v23 = vld [vmem:[%s0 + $0x30] sm:$0xff]
    %v24 = vld [vmem:[%s0 + $0x38] sm:$0xff]
    %v25 = vld [vmem:[%s0 + $0x40] sm:$0xff]
    %v26 = vld [vmem:[%s0 + $0x48] sm:$0xff]
    %v27 = vld [vmem:[%s0 + $0x50] sm:$0xff]
    %v28 = vld [vmem:[%s0 + $0x58] sm:$0xff]
    %v29 = vld [vmem:[%s0 + $0x60] sm:$0xff]
    %v30 = vld [vmem:[%s0 + $0x68] sm:$0xff]
    %v31 = vld [vmem:[%s0 + $0x70] sm:$0xff]
    %v32 = vld [vmem:[%s0 + $0x78] sm:$0xff]
    %v33 = vld [vmem:[%s0 + $0x80] sm:$0xff]
    %v34 = vld [vmem:[%s0 + $0x88] sm:$0xff]
    %v35 = vld [vmem:[%s0 + $0x90] sm:$0xff]
    %v36 = vld [vmem:[%s0 + $0x98] sm:$0xff]
    %v37 = vld [vmem:[%s0 + $0xa0] sm:$0xff]
    %v38 = vld [vmem:[%s0 + $0xa8] sm:$0xff]
    %v39 = vld [vmem:[%s0 + $0xb0] sm:$0xff]
    %v40 = vld [vmem:[%s0 + $0xb8] sm:$0xff]
    %v41 = vld [vmem:[%s0 + $0xc0] sm:$0xff]
    %v42 = vld [vmem:[%s0 + $0xc8] sm:$0xff]
    %v43 = vld [vmem:[%s0 + $0xd0] sm:$0xff]
    %v44 = vld [vmem:[%s0 + $0xd8] sm:$0xff]
    %v45 = vld [vmem:[%s0 + $0xe0] sm:$0xff]
    %v46 = vld [vmem:[%s0 + $0xe8] sm:$0xff]
    %v47 = vld [vmem:[%s0 + $0xf0] sm:$0xff]
    %v48 = vld [vmem:[%s0 + $0xf8] sm:$0xff]
    %v49 = vld [vmem:[%s2] sm:$0xff]
    %v50 = vld [vmem:[%s2 + $0x8] sm:$0x1f]
    %52 = vset.pattern.permute.xlu0 0
    %53 = vperm.xlu0 %52, %v49
    %v54 = vpop.permute.xlu0 %53
    %57 = vset.pattern.permute.xlu0 0
    %58 = vperm.xlu0 %57, %v50
    %v59 = vpop.permute.xlu0 %58
    %vm61 = vcmask 523264
    %v63 = vsel %vm61, %v15, 0
    %v66 = vsel %vm61, %v16, 0
    %v69 = vsel %vm61, %v17, 0
    %v72 = vsel %vm61, %v18, 0
    %v75 = vsel %vm61, %v19, 0
    %v78 = vsel %vm61, %v20, 0
    %v81 = vsel %vm61, %v21, 0
    %v84 = vsel %vm61, %v22, 0
    %v87 = vsel %vm61, %v23, 0
    %v90 = vsel %vm61, %v24, 0
    %v93 = vsel %vm61, %v25, 0
    %v96 = vsel %vm61, %v26, 0
    %v99 = vsel %vm61, %v27, 0
    %v102 = vsel %vm61, %v28, 0
    %v105 = vsel %vm61, %v29, 0
    %v108 = vsel %vm61, %v30, 0
    %v111 = vsel %vm61, %v31, 0
    %v114 = vsel %vm61, %v32, 0
    %v117 = vsel %vm61, %v33, 0
    %v120 = vsel %vm61, %v34, 0
    %v123 = vsel %vm61, %v35, 0
    %v126 = vsel %vm61, %v36, 0
    %v129 = vsel %vm61, %v37, 0
    %v132 = vsel %vm61, %v38, 0
    %v135 = vsel %vm61, %v39, 0
    %v138 = vsel %vm61, %v40, 0
    %v141 = vsel %vm61, %v41, 0
    %v144 = vsel %vm61, %v42, 0
    %v147 = vsel %vm61, %v43, 0
    %v150 = vsel %vm61, %v44, 0
    %v153 = vsel %vm61, %v45, 0
    %v156 = vsel %vm61, %v46, 0
    %v159 = vsel %vm61, %v47, 0
    %v162 = vsel %vm61, %v48, 0
    %164 = vmatprep.subr.mxu0 0.0
    %165 = vmatpush1.xpose.msra.mxu0 %v114
    %166 = vmatprep.subr.mxu0 0.0
    %167 = vmatpush1.xpose.msra.mxu0 %v111
    %168 = vmatprep.subr.mxu0 0.0
    %169 = vmatpush1.xpose.msra.mxu0 %v108
    %170 = vmatprep.subr.mxu0 0.0
    %171 = vmatpush1.xpose.msra.mxu0 %v105
    %172 = vmatprep.subr.mxu0 0.0
    %173 = vmatpush1.xpose.msra.mxu0 %v102
    %174 = vmatprep.subr.mxu0 0.0
    %175 = vmatpush1.xpose.msra.mxu0 %v99
    %176 = vmatprep.subr.mxu0 0.0
    %177 = vmatpush1.xpose.msra.mxu0 %v96
    %178 = vmatprep.subr.mxu0 0.0
    %179 = vmatpush1.xpose.msra.mxu0 %v93
    %180 = vmatprep.subr.mxu0 0.0
    %181 = vmatpush1.xpose.msra.mxu0 %v90
    %182 = vmatprep.subr.mxu0 0.0
    %183 = vmatpush1.xpose.msra.mxu0 %v87
    %184 = vmatprep.subr.mxu0 0.0
    %185 = vmatpush1.xpose.msra.mxu0 %v84
    %186 = vmatprep.subr.mxu0 0.0
    %187 = vmatpush1.xpose.msra.mxu0 %v81
    %188 = vmatprep.subr.mxu0 0.0
    %189 = vmatpush1.xpose.msra.mxu0 %v78
    %190 = vmatprep.subr.mxu0 0.0
    %191 = vmatpush1.xpose.msra.mxu0 %v75
    %192 = vmatprep.subr.mxu0 0.0
    %193 = vmatpush1.xpose.msra.mxu0 %v72
    %194 = vmatprep.subr.mxu0 0.0
    %195 = vmatpush1.xpose.msra.mxu0 %v69
    %196 = vmatprep.subr.mxu0 0.0
    %197 = vmatpush2.xpose.msra.mxu0 %v162
    %198 = vmatprep.subr.mxu0 0.0
    %199 = vmatpush2.xpose.msra.mxu0 %v159
    %200 = vmatprep.subr.mxu0 0.0
    %201 = vmatpush2.xpose.msra.mxu0 %v156
    %202 = vmatprep.subr.mxu0 0.0
    %203 = vmatpush2.xpose.msra.mxu0 %v153
    %204 = vmatprep.subr.mxu0 0.0
    %205 = vmatpush2.xpose.msra.mxu0 %v150
    %206 = vmatprep.subr.mxu0 0.0
    %207 = vmatpush2.xpose.msra.mxu0 %v147
    %208 = vmatprep.subr.mxu0 0.0
    %209 = vmatpush2.xpose.msra.mxu0 %v144
    %210 = vmatprep.subr.mxu0 0.0
    %211 = vmatpush2.xpose.msra.mxu0 %v141
    %212 = vmatprep.subr.mxu0 0.0
    %213 = vmatpush2.xpose.msra.mxu0 %v138
    %214 = vmatprep.subr.mxu0 0.0
    %215 = vmatpush2.xpose.msra.mxu0 %v135
    %216 = vmatprep.subr.mxu0 0.0
    %217 = vmatpush2.xpose.msra.mxu0 %v132
    %218 = vmatprep.subr.mxu0 0.0
    %219 = vmatpush2.xpose.msra.mxu0 %v129
    %220 = vmatprep.subr.mxu0 0.0
    %221 = vmatpush2.xpose.msra.mxu0 %v126
    %222 = vmatprep.subr.mxu0 0.0
    %223 = vmatpush2.xpose.msra.mxu0 %v123
    %224 = vmatprep.subr.mxu0 0.0
    %225 = vmatpush2.xpose.msra.mxu0 %v120
    %226 = vmatprep.subr.mxu0 0.0
    %227 = vmatpush2.xpose.msra.mxu0 %v117
    %228 = vmatprep.mubr.f32.mxu0 0.0
    %229 = vmatmul.mubr.f32.gmra.mxu0 %v63
    %v230 = vpop.f32.mrf.mxu0
    %v231 = vadd.f32 %v54, %v230
    %v232 = vpop.f32.mrf.mxu0
    %v233 = vadd.f32 %v54, %v232
    %234 = vmatprep.mubr.f32.mxu0 0.0
    %235 = vmatmul.mubr.f32.gmra.mxu0 %v66
    %v236 = vpop.f32.mrf.mxu0
    %v237 = vadd.f32 %v59, %v236
    %v238 = vpop.f32.mrf.mxu0
    %v239 = vadd.f32 %v59, %v238
    %240 = vdwg.mxu0
    %241 = vst [vmem:[#allocation2] sm:$0xff] %v231
    %242 = vst [vmem:[#allocation2 + $0x8] sm:$0xff] %v233
    %243 = vst [vmem:[#allocation2 + $0x10] sm:$0x1f] %v237
    %244 = vst [vmem:[#allocation2 + $0x18] sm:$0x1f] %v239
    // Predicated region
    $region14: #{tpu_custom_call.1} parent=1 // pred_check
      _
    $region15: #{tpu_custom_call.1} parent=1 // pred_check_branch
      %246 = sbr.rel (0) target = $region17
    $region16: #{tpu_custom_call.1} parent=1 // pred_region
      %s248 = ssub.s32 512, 512
      %249 = vsyncadd [#allocation3], %s248
      %s250 = sshll.u32 [#allocation2], 4
      %s251 = int_to_ptr.vmem [resolvable:$true] %s250
      %256 = dma.vmem_to_hbm [thread:$0]  %s251, 512, %s3, [#allocation3], 256, 256, 16
    $region17: #{tpu_custom_call.1} parent=1 // pred_fallthru
      _
    // Predicated region
    $region18: #{tpu_custom_call.1} parent=1 // pred_check
      _
    $region19: #{tpu_custom_call.1} parent=1 // pred_check_branch
      %258 = sbr.rel (0) target = $region21
    $region20: #{tpu_custom_call.1} parent=1 // pred_region
      %259 = dma.done [#allocation3], 512
    $region21: #{tpu_custom_call.1} parent=1 // pred_fallthru
      _
    %260 = vsyncpa [#allocation3], 1

</llo_original>
